<compile_context>
chip_gen: v5e
topology: v5e:2x2
jax: 0.10.0
libtpu: 0.0.40
codegen_flags: <defaults>
</compile_context>

<pallas_src>
import functools

import jax
import jax.numpy as jnp
from jax.experimental import pallas as pl
from jax.experimental.pallas import tpu as pltpu


def make_divisible(v, divisor, min_val=None):
    if min_val is None:
        min_val = divisor
    new_v = max(min_val, int(v + divisor / 2) // divisor * divisor)
    if new_v < 0.9 * v:
        new_v += divisor
    return new_v


# --------------------------------------------------------------------------
# Kernels
# --------------------------------------------------------------------------

def se_kernel(x_ref, w1t_ref, b1_ref, w2t_ref, b2_ref, o_ref):
    """Single-slab path: whole (C, HW) per image resident in VMEM."""
    # x_ref: (B, C, HW)   w1t: (C, M)  b1: (1, M)  w2t: (M, C)  b2: (1, C)
    x = x_ref[...]                                            # native dtype
    hw = x.shape[-1]

    # Global average pool over spatial (f32 accumulation, no f32 tile copy).
    m = jnp.sum(x, axis=-1, dtype=jnp.float32) * (1.0 / hw)   # (B, C)

    # 1x1 conv "reduce" + ReLU (lane-major: output lanes = M).
    h = jnp.dot(m, w1t_ref[...], preferred_element_type=jnp.float32) + b1_ref[...]
    h = jnp.maximum(h, 0.0)                                   # (B, M)

    # 1x1 conv "expand" + Hsigmoid: relu6(y + 3) / 6 (lanes = C).
    y = jnp.dot(h, w2t_ref[...], preferred_element_type=jnp.float32) + b2_ref[...]
    y = jnp.clip(y + 3.0, 0.0, 6.0) * (1.0 / 6.0)             # (B, C)

    # Channel-wise scale; the big multiply stays in x's native dtype.
    o_ref[...] = (x * y.astype(x.dtype)[:, :, None]).astype(o_ref.dtype)


def _pool_gate_kernel(x_ref, w1t_ref, b1_ref, w2t_ref, b2_ref, y_ref, acc_ref,
                      *, hw_total, thw):
    """Two-pass fallback, pass 1: pooled sum across HW blocks + excitation."""
    s = pl.program_id(1)

    @pl.when(s == 0)
    def _():
        acc_ref[...] = jnp.zeros_like(acc_ref)

    x = x_ref[...]                                            # (B, C, THW)
    if hw_total % thw == 0:
        acc_ref[...] += jnp.sum(x, axis=-1, dtype=jnp.float32)
    else:
        # Ragged last HW block: mask out-of-range lanes before accumulating.
        lane = jax.lax.broadcasted_iota(jnp.int32, x.shape, 2)
        valid = (s * thw + lane) < hw_total
        acc_ref[...] += jnp.sum(jnp.where(valid, x, jnp.zeros_like(x)),
                                axis=-1, dtype=jnp.float32)

    @pl.when(s == pl.num_programs(1) - 1)
    def _():
        m = acc_ref[...] * (1.0 / hw_total)                   # (B, C)
        h = jnp.dot(m, w1t_ref[...], preferred_element_type=jnp.float32) + b1_ref[...]
        h = jnp.maximum(h, 0.0)
        y = jnp.dot(h, w2t_ref[...], preferred_element_type=jnp.float32) + b2_ref[...]
        y = jnp.clip(y + 3.0, 0.0, 6.0) * (1.0 / 6.0)
        y_ref[...] = y[:, :, None]                            # (B, C, 1)


def _scale_kernel(x_ref, y_ref, o_ref):
    """Two-pass fallback, pass 2: apply the excitation gate per HW block."""
    x = x_ref[...]                                            # (B, C, THW)
    o_ref[...] = (x * y_ref[...].astype(x.dtype)).astype(o_ref.dtype)


# --------------------------------------------------------------------------
# Sizing helpers
# --------------------------------------------------------------------------

def _gen_vmem_limit():
    """Generation-aware VMEM limit with headroom below physical capacity."""
    try:
        phys = int(pltpu.get_tpu_info().vmem_capacity_bytes)
    except Exception:
        phys = 64 * 1024 * 1024          # conservative (v7x-class) default
    if phys <= 64 * 1024 * 1024:
        return 48 * 1024 * 1024          # v7x: 64 MiB physical, leave scratch room
    return 96 * 1024 * 1024              # v5e/v6e: 128 MiB physical


def _pick_batch_block(N, per_image_bytes, budget_bytes):
    """Largest batch block whose double-buffered in+out tiles fit; 0 => no fit."""
    max_b = budget_bytes // max(1, 4 * per_image_bytes)       # 2 bufs x (in + out)
    if max_b < 1:
        return 0                         # single image slab doesn't fit -> HW tiling
    b = int(min(max_b, N))
    if N >= 2:
        b = min(b, (N + 1) // 2)         # keep grid >= 2: both v7x TCs get work
    return max(1, b)


def _pick_hw_tile(C, HW, dtype_bytes, budget_bytes):
    """HW block for the two-pass path (binding constraint: in+out double-buffered)."""
    max_thw = budget_bytes // max(1, 4 * C * dtype_bytes)
    thw = max(128, (max_thw // 128) * 128)   # last block dim must be 128-multiple
    if thw >= HW:
        thw = HW                              # or equal the full dim
    return thw


def _wspec(shape, index_map, single_buffer):
    """Weight/bias spec: constant block, so one VMEM buffer is enough."""
    if single_buffer:
        return pl.BlockSpec(shape, index_map, pipeline_mode=pl.Buffered(1))
    return pl.BlockSpec(shape, index_map)


# --------------------------------------------------------------------------
# pallas_call wrappers
# --------------------------------------------------------------------------

def _se_single_slab(args, N, C, HW, M, B, dtype_bytes, vmem_limit, w_bytes,
                    single_buf):
    x, w1t, b1r, w2t, b2r = args
    grid = (pl.cdiv(N, B),)
    flops = 2 * N * C * HW + 4 * N * C * M
    bytes_accessed = 2 * N * C * HW * dtype_bytes + w_bytes

    # Block (B, C, HW) is legal: the last two dims equal the full array dims.
    return pl.pallas_call(
        se_kernel,
        out_shape=jax.ShapeDtypeStruct((N, C, HW), x.dtype),
        grid_spec=pltpu.PrefetchScalarGridSpec(
            num_scalar_prefetch=0,
            grid=grid,
            in_specs=[
                pl.BlockSpec((B, C, HW), lambda n: (n, 0, 0)),
                _wspec((C, M), lambda n: (0, 0), single_buf),
                _wspec((1, M), lambda n: (0, 0), single_buf),
                _wspec((M, C), lambda n: (0, 0), single_buf),
                _wspec((1, C), lambda n: (0, 0), single_buf),
            ],
            out_specs=pl.BlockSpec((B, C, HW), lambda n: (n, 0, 0)),
        ),
        compiler_params=pltpu.CompilerParams(
            dimension_semantics=("parallel",),
            vmem_limit_bytes=vmem_limit,
        ),
        cost_estimate=pl.CostEstimate(
            flops=flops, transcendentals=0, bytes_accessed=bytes_accessed),
    )(x, w1t, b1r, w2t, b2r)


def _se_two_pass(args, N, C, HW, M, dtype_bytes, vmem_limit, w_bytes,
                 budget, thw_override, single_buf):
    x, w1t, b1r, w2t, b2r = args
    B = 1                                           # images are huge in this regime
    thw = thw_override if thw_override is not None else _pick_hw_tile(
        C, HW, dtype_bytes, budget)
    grid = (pl.cdiv(N, B), pl.cdiv(HW, thw))

    pool_kernel = functools.partial(_pool_gate_kernel, hw_total=HW, thw=thw)

    # Pass 1: pooled gate per image (HW axis is the resident-accumulator axis).
    gate = pl.pallas_call(
        pool_kernel,
        out_shape=jax.ShapeDtypeStruct((N, C, 1), jnp.float32),
        grid_spec=pltpu.PrefetchScalarGridSpec(
            num_scalar_prefetch=0,
            grid=grid,
            in_specs=[
                pl.BlockSpec((B, C, thw), lambda n, s: (n, 0, s)),
                _wspec((C, M), lambda n, s: (0, 0), single_buf),
                _wspec((1, M), lambda n, s: (0, 0), single_buf),
                _wspec((M, C), lambda n, s: (0, 0), single_buf),
                _wspec((1, C), lambda n, s: (0, 0), single_buf),
            ],
            out_specs=pl.BlockSpec((B, C, 1), lambda n, s: (n, 0, 0)),
            scratch_shapes=[pltpu.VMEM((B, C), jnp.float32)],
        ),
        compiler_params=pltpu.CompilerParams(
            dimension_semantics=("parallel", "arbitrary"),
            vmem_limit_bytes=vmem_limit,
        ),
        cost_estimate=pl.CostEstimate(
            flops=N * C * HW + 4 * N * C * M, transcendentals=0,
            bytes_accessed=N * C * HW * dtype_bytes + w_bytes),
    )(x, w1t, b1r, w2t, b2r)

    # Pass 2: stream x again and scale by the gate.
    out = pl.pallas_call(
        _scale_kernel,
        out_shape=jax.ShapeDtypeStruct((N, C, HW), x.dtype),
        grid_spec=pltpu.PrefetchScalarGridSpec(
            num_scalar_prefetch=0,
            grid=grid,
            in_specs=[
                pl.BlockSpec((B, C, thw), lambda n, s: (n, 0, s)),
                pl.BlockSpec((B, C, 1), lambda n, s: (n, 0, 0)),
            ],
            out_specs=pl.BlockSpec((B, C, thw), lambda n, s: (n, 0, s)),
        ),
        compiler_params=pltpu.CompilerParams(
            dimension_semantics=("parallel", "parallel"),
            vmem_limit_bytes=vmem_limit,
        ),
        cost_estimate=pl.CostEstimate(
            flops=N * C * HW, transcendentals=0,
            bytes_accessed=2 * N * C * HW * dtype_bytes + 4 * N * C),
    )(x, gate)
    return out


def se_module(x_nchw, w1, b1, w2, b2, *, force_two_pass=False, thw_override=None):
    N, C, H, W = x_nchw.shape
    HW = H * W
    M = w1.shape[0]

    x = x_nchw.reshape(N, C, HW)
    w1t = jnp.transpose(w1)        # (C, M)  lane-major "reduce" weight
    w2t = jnp.transpose(w2)        # (M, C)  lane-major "expand" weight
    b1r = b1.reshape(1, M)
    b2r = b2.reshape(1, C)

    dtype_bytes = jnp.dtype(x.dtype).itemsize
    vmem_limit = _gen_vmem_limit()
    w_bytes = ((w1t.size + w2t.size) * jnp.dtype(w1t.dtype).itemsize
               + (b1r.size + b2r.size) * jnp.dtype(b1r.dtype).itemsize)
    # x-tile budget: VMEM limit minus (possibly double-buffered) weights and a
    # margin for Mosaic internal scratch / semaphores.
    budget = max(2 * 1024 * 1024, vmem_limit - 2 * w_bytes - 4 * 1024 * 1024)

    per_image = C * HW * dtype_bytes
    B = 0 if force_two_pass else _pick_batch_block(N, per_image, budget)

    args = (x, w1t, b1r, w2t, b2r)
    out = None
    # Try single-buffered weight specs first; fall back to default double
    # buffering if this Pallas build rejects pipeline_mode / Buffered(1).
    for single_buf in (True, False):
        try:
            if B >= 1:
                out = _se_single_slab(args, N, C, HW, M, B, dtype_bytes,
                                      vmem_limit, w_bytes, single_buf)
            else:
                out = _se_two_pass(args, N, C, HW, M, dtype_bytes, vmem_limit,
                                   w_bytes, budget, thw_override, single_buf)
            break
        except Exception:
            if not single_buf:
                raise
    return out.reshape(N, C, H, W)


# --------------------------------------------------------------------------
# Reference + self-test
# --------------------------------------------------------------------------

def se_reference(x, w1, b1, w2, b2):
    # Pure-JAX reference matching the PyTorch forward.
    y = x.mean(axis=3, keepdims=True).mean(axis=2, keepdims=True)      # (N,C,1,1)
    y = jnp.einsum("mc,nchw->nmhw", w1, y) + b1[None, :, None, None]
    y = jnp.maximum(y, 0.0)
    y = jnp.einsum("cm,nmhw->nchw", w2, y) + b2[None, :, None, None]
    y = jnp.clip(y + 3.0, 0.0, 6.0) / 6.0
    return x * y


if __name__ == "__main__":
    C = 16
    REDUCTION = 4
    num_mid = make_divisible(C // REDUCTION, divisor=8)  # -> 8

    key = jax.random.PRNGKey(0)
    kx, kx2, k1, kb1, k2, kb2 = jax.random.split(key, 6)
    # Conv2d(C, num_mid, 1) -> (num_mid, C); Conv2d(num_mid, C, 1) -> (C, num_mid)
    w1 = jax.random.normal(k1, (num_mid, C), dtype=jnp.float32) * 0.1
    b1 = jax.random.normal(kb1, (num_mid,), dtype=jnp.float32) * 0.1
    w2 = jax.random.normal(k2, (C, num_mid), dtype=jnp.float32) * 0.1
    b2 = jax.random.normal(kb2, (C,), dtype=jnp.float32) * 0.1

    # Path 1: single-slab path (N=3 exercises the ragged last batch block of
    # the cdiv grid and the ceil(N/2) megacore cap).
    x = jax.random.normal(kx, (3, C, 16, 16), dtype=jnp.float32)
    out = se_module(x, w1, b1, w2, b2)
    jax.block_until_ready(out)
    ref = se_reference(x, w1, b1, w2, b2)
    assert jnp.allclose(out, ref, atol=1e-5, rtol=1e-5), "single-slab mismatch"

    # Path 2: HW-tiled two-pass fallback, forced at a small shape.  HW=400 with
    # thw=128 exercises cross-block pool accumulation and the masked ragged
    # last HW tile.
    x2 = jax.random.normal(kx2, (2, C, 20, 20), dtype=jnp.float32)
    out2 = se_module(x2, w1, b1, w2, b2, force_two_pass=True, thw_override=128)
    jax.block_until_ready(out2)
    ref2 = se_reference(x2, w1, b1, w2, b2)
    assert jnp.allclose(out2, ref2, atol=1e-5, rtol=1e-5), "two-pass mismatch"

    print("KERNEL_OK")
</pallas_src>

<mosaic_0001>
module attributes {stable_mosaic.version = 11 : i64} {
  func.func @se_kernel(%arg0: i32, %arg1: memref<2x16x256xf32, #tpu.memory_space<vmem>>, %arg2: memref<16x8xf32, #tpu.memory_space<vmem>>, %arg3: memref<1x8xf32, #tpu.memory_space<vmem>>, %arg4: memref<8x16xf32, #tpu.memory_space<vmem>>, %arg5: memref<1x16xf32, #tpu.memory_space<vmem>>, %arg6: memref<2x16x256xf32, #tpu.memory_space<vmem>>) attributes {dimension_semantics = [#tpu.dimension_semantics<parallel>], iteration_bounds = array<i64: 2>, scalar_prefetch = 0 : i64, scratch_operands = 0 : i64, tpu.core_type = #tpu.core_type<tc>, window_params = [{transform_indices = @transform_0, window_bounds = array<i64: 2, 16, 256>}, {pipeline_mode = #tpu.pipeline_mode<synchronous>, transform_indices = @transform_1, window_bounds = array<i64: 16, 8>}, {pipeline_mode = #tpu.pipeline_mode<synchronous>, transform_indices = @transform_2, window_bounds = array<i64: 1, 8>}, {pipeline_mode = #tpu.pipeline_mode<synchronous>, transform_indices = @transform_3, window_bounds = array<i64: 8, 16>}, {pipeline_mode = #tpu.pipeline_mode<synchronous>, transform_indices = @transform_4, window_bounds = array<i64: 1, 16>}, {transform_indices = @transform_5, window_bounds = array<i64: 2, 16, 256>}]} {
    %c0 = arith.constant 0 : index
    %c0_0 = arith.constant 0 : index
    %c0_1 = arith.constant 0 : index
    %0 = vector.load %arg1[%c0, %c0_0, %c0_1] : memref<2x16x256xf32, #tpu.memory_space<vmem>>, vector<2x16x256xf32>
    %cst = arith.constant dense<0.000000e+00> : vector<2x16xf32>
    %1 = vector.multi_reduction <add>, %0, %cst [2] : vector<2x16x256xf32> to vector<2x16xf32>
    %cst_2 = arith.constant 3.906250e-03 : f32
    %2 = vector.broadcast %cst_2 : f32 to vector<2x16xf32>
    %3 = arith.mulf %1, %2 : vector<2x16xf32>
    %c0_3 = arith.constant 0 : index
    %c0_4 = arith.constant 0 : index
    %4 = vector.load %arg2[%c0_3, %c0_4] : memref<16x8xf32, #tpu.memory_space<vmem>>, vector<16x8xf32>
    %cst_5 = arith.constant dense<0.000000e+00> : vector<2x8xf32>
    %5 = tpu.matmul %3, %4, %cst_5 {dimension_numbers = #tpu.dot_dimension_numbers<[1], [0], [0], [1], [0, 0, 1, 1], [], []>} : vector<2x16xf32>, vector<16x8xf32>, vector<2x8xf32> -> vector<2x8xf32>
    %c0_6 = arith.constant 0 : index
    %c0_7 = arith.constant 0 : index
    %6 = vector.load %arg3[%c0_6, %c0_7] : memref<1x8xf32, #tpu.memory_space<vmem>>, vector<1x8xf32>
    %7 = vector.broadcast %6 : vector<1x8xf32> to vector<2x8xf32>
    %8 = arith.addf %5, %7 : vector<2x8xf32>
    %cst_8 = arith.constant 0.000000e+00 : f32
    %9 = vector.broadcast %cst_8 : f32 to vector<2x8xf32>
    %10 = arith.maximumf %8, %9 : vector<2x8xf32>
    %c0_9 = arith.constant 0 : index
    %c0_10 = arith.constant 0 : index
    %11 = vector.load %arg4[%c0_9, %c0_10] : memref<8x16xf32, #tpu.memory_space<vmem>>, vector<8x16xf32>
    %cst_11 = arith.constant dense<0.000000e+00> : vector<2x16xf32>
    %12 = tpu.matmul %10, %11, %cst_11 {dimension_numbers = #tpu.dot_dimension_numbers<[1], [0], [0], [1], [0, 0, 1, 1], [], []>} : vector<2x8xf32>, vector<8x16xf32>, vector<2x16xf32> -> vector<2x16xf32>
    %c0_12 = arith.constant 0 : index
    %c0_13 = arith.constant 0 : index
    %13 = vector.load %arg5[%c0_12, %c0_13] : memref<1x16xf32, #tpu.memory_space<vmem>>, vector<1x16xf32>
    %14 = vector.broadcast %13 : vector<1x16xf32> to vector<2x16xf32>
    %15 = arith.addf %12, %14 : vector<2x16xf32>
    %cst_14 = arith.constant 3.000000e+00 : f32
    %16 = vector.broadcast %cst_14 : f32 to vector<2x16xf32>
    %17 = arith.addf %15, %16 : vector<2x16xf32>
    %cst_15 = arith.constant 0.000000e+00 : f32
    %cst_16 = arith.constant 6.000000e+00 : f32
    %18 = vector.broadcast %cst_15 : f32 to vector<2x16xf32>
    %19 = arith.maximumf %18, %17 : vector<2x16xf32>
    %20 = vector.broadcast %cst_16 : f32 to vector<2x16xf32>
    %21 = arith.minimumf %20, %19 : vector<2x16xf32>
    %cst_17 = arith.constant 0.166666672 : f32
    %22 = vector.broadcast %cst_17 : f32 to vector<2x16xf32>
    %23 = arith.mulf %21, %22 : vector<2x16xf32>
    %24 = vector.shape_cast %23 : vector<2x16xf32> to vector<2x16x1xf32>
    %25 = vector.broadcast %24 : vector<2x16x1xf32> to vector<2x16x256xf32>
    %26 = arith.mulf %0, %25 : vector<2x16x256xf32>
    %c0_18 = arith.constant 0 : index
    %c0_19 = arith.constant 0 : index
    %c0_20 = arith.constant 0 : index
    %27 = vector.load %arg6[%c0_18, %c0_19, %c0_20] : memref<2x16x256xf32, #tpu.memory_space<vmem>>, vector<2x16x256xf32>
    tpu.vector_store %arg6[%c0_18, %c0_19, %c0_20], %26 {strides = array<i32>} : memref<2x16x256xf32, #tpu.memory_space<vmem>>, vector<2x16x256xf32>,
    return
  }
  func.func @transform_0(%arg0: i32) -> (i32, i32, i32) {
    %c0_i32 = arith.constant 0 : i32
    %c0_i32_0 = arith.constant 0 : i32
    %c0_i32_1 = arith.constant 0 : i32
    return %arg0, %c0_i32, %c0_i32_0 : i32, i32, i32
  }
  func.func @transform_1(%arg0: i32) -> (i32, i32) {
    %c0_i32 = arith.constant 0 : i32
    %c0_i32_0 = arith.constant 0 : i32
    %c0_i32_1 = arith.constant 0 : i32
    return %c0_i32, %c0_i32_0 : i32, i32
  }
  func.func @transform_2(%arg0: i32) -> (i32, i32) {
    %c0_i32 = arith.constant 0 : i32
    %c0_i32_0 = arith.constant 0 : i32
    %c0_i32_1 = arith.constant 0 : i32
    return %c0_i32, %c0_i32_0 : i32, i32
  }
  func.func @transform_3(%arg0: i32) -> (i32, i32) {
    %c0_i32 = arith.constant 0 : i32
    %c0_i32_0 = arith.constant 0 : i32
    %c0_i32_1 = arith.constant 0 : i32
    return %c0_i32, %c0_i32_0 : i32, i32
  }
  func.func @transform_4(%arg0: i32) -> (i32, i32) {
    %c0_i32 = arith.constant 0 : i32
    %c0_i32_0 = arith.constant 0 : i32
    %c0_i32_1 = arith.constant 0 : i32
    return %c0_i32, %c0_i32_0 : i32, i32
  }
  func.func @transform_5(%arg0: i32) -> (i32, i32, i32) {
    %c0_i32 = arith.constant 0 : i32
    %c0_i32_0 = arith.constant 0 : i32
    %c0_i32_1 = arith.constant 0 : i32
    return %arg0, %c0_i32, %c0_i32_0 : i32, i32, i32
  }
}

module attributes {stable_mosaic.version = 11 : i64} {
  func.func @se_kernel(%arg0: i32, %arg1: memref<2x16x256xf32, #tpu.memory_space<vmem>>, %arg2: memref<16x8xf32, #tpu.memory_space<vmem>>, %arg3: memref<1x8xf32, #tpu.memory_space<vmem>>, %arg4: memref<8x16xf32, #tpu.memory_space<vmem>>, %arg5: memref<1x16xf32, #tpu.memory_space<vmem>>, %arg6: memref<2x16x256xf32, #tpu.memory_space<vmem>>) attributes {dimension_semantics = [#tpu.dimension_semantics<parallel>], iteration_bounds = array<i64: 2>, scalar_prefetch = 0 : i64, scratch_operands = 0 : i64, tpu.core_type = #tpu.core_type<tc>, window_params = [{transform_indices = @transform_0, window_bounds = array<i64: 2, 16, 256>}, {pipeline_mode = #tpu.pipeline_mode<synchronous>, transform_indices = @transform_1, window_bounds = array<i64: 16, 8>}, {pipeline_mode = #tpu.pipeline_mode<synchronous>, transform_indices = @transform_2, window_bounds = array<i64: 1, 8>}, {pipeline_mode = #tpu.pipeline_mode<synchronous>, transform_indices = @transform_3, window_bounds = array<i64: 8, 16>}, {pipeline_mode = #tpu.pipeline_mode<synchronous>, transform_indices = @transform_4, window_bounds = array<i64: 1, 16>}, {transform_indices = @transform_5, window_bounds = array<i64: 2, 16, 256>}]} {
    %c0 = arith.constant 0 : index
    %c0_0 = arith.constant 0 : index
    %c0_1 = arith.constant 0 : index
    %0 = vector.load %arg1[%c0, %c0_0, %c0_1] : memref<2x16x256xf32, #tpu.memory_space<vmem>>, vector<2x16x256xf32>
    %cst = arith.constant dense<0.000000e+00> : vector<2x16xf32>
    %1 = vector.multi_reduction <add>, %0, %cst [2] : vector<2x16x256xf32> to vector<2x16xf32>
    %cst_2 = arith.constant 3.906250e-03 : f32
    %2 = vector.broadcast %cst_2 : f32 to vector<2x16xf32>
    %3 = arith.mulf %1, %2 : vector<2x16xf32>
    %c0_3 = arith.constant 0 : index
    %c0_4 = arith.constant 0 : index
    %4 = vector.load %arg2[%c0_3, %c0_4] : memref<16x8xf32, #tpu.memory_space<vmem>>, vector<16x8xf32>
    %cst_5 = arith.constant dense<0.000000e+00> : vector<2x8xf32>
    %5 = tpu.matmul %3, %4, %cst_5 {dimension_numbers = #tpu.dot_dimension_numbers<[1], [0], [0], [1], [0, 0, 1, 1], [], []>} : vector<2x16xf32>, vector<16x8xf32>, vector<2x8xf32> -> vector<2x8xf32>
    %c0_6 = arith.constant 0 : index
    %c0_7 = arith.constant 0 : index
    %6 = vector.load %arg3[%c0_6, %c0_7] : memref<1x8xf32, #tpu.memory_space<vmem>>, vector<1x8xf32>
    %7 = vector.broadcast %6 : vector<1x8xf32> to vector<2x8xf32>
    %8 = arith.addf %5, %7 : vector<2x8xf32>
    %cst_8 = arith.constant 0.000000e+00 : f32
    %9 = vector.broadcast %cst_8 : f32 to vector<2x8xf32>
    %10 = arith.maximumf %8, %9 : vector<2x8xf32>
    %c0_9 = arith.constant 0 : index
    %c0_10 = arith.constant 0 : index
    %11 = vector.load %arg4[%c0_9, %c0_10] : memref<8x16xf32, #tpu.memory_space<vmem>>, vector<8x16xf32>
    %cst_11 = arith.constant dense<0.000000e+00> : vector<2x16xf32>
    %12 = tpu.matmul %10, %11, %cst_11 {dimension_numbers = #tpu.dot_dimension_numbers<[1], [0], [0], [1], [0, 0, 1, 1], [], []>} : vector<2x8xf32>, vector<8x16xf32>, vector<2x16xf32> -> vector<2x16xf32>
    %c0_12 = arith.constant 0 : index
    %c0_13 = arith.constant 0 : index
    %13 = vector.load %arg5[%c0_12, %c0_13] : memref<1x16xf32, #tpu.memory_space<vmem>>, vector<1x16xf32>
    %14 = vector.broadcast %13 : vector<1x16xf32> to vector<2x16xf32>
    %15 = arith.addf %12, %14 : vector<2x16xf32>
    %cst_14 = arith.constant 3.000000e+00 : f32
    %16 = vector.broadcast %cst_14 : f32 to vector<2x16xf32>
    %17 = arith.addf %15, %16 : vector<2x16xf32>
    %cst_15 = arith.constant 0.000000e+00 : f32
    %cst_16 = arith.constant 6.000000e+00 : f32
    %18 = vector.broadcast %cst_15 : f32 to vector<2x16xf32>
    %19 = arith.maximumf %18, %17 : vector<2x16xf32>
    %20 = vector.broadcast %cst_16 : f32 to vector<2x16xf32>
    %21 = arith.minimumf %20, %19 : vector<2x16xf32>
    %cst_17 = arith.constant 0.166666672 : f32
    %22 = vector.broadcast %cst_17 : f32 to vector<2x16xf32>
    %23 = arith.mulf %21, %22 : vector<2x16xf32>
    %24 = vector.shape_cast %23 : vector<2x16xf32> to vector<2x16x1xf32>
    %25 = vector.broadcast %24 : vector<2x16x1xf32> to vector<2x16x256xf32>
    %26 = arith.mulf %0, %25 : vector<2x16x256xf32>
    %c0_18 = arith.constant 0 : index
    %c0_19 = arith.constant 0 : index
    %c0_20 = arith.constant 0 : index
    %27 = vector.load %arg6[%c0_18, %c0_19, %c0_20] : memref<2x16x256xf32, #tpu.memory_space<vmem>>, vector<2x16x256xf32>
    tpu.vector_store %arg6[%c0_18, %c0_19, %c0_20], %26 {strides = array<i32>} : memref<2x16x256xf32, #tpu.memory_space<vmem>>, vector<2x16x256xf32>,
    return
  }
  func.func @transform_0(%arg0: i32) -> (i32, i32, i32) {
    %c0_i32 = arith.constant 0 : i32
    %c0_i32_0 = arith.constant 0 : i32
    %c0_i32_1 = arith.constant 0 : i32
    return %arg0, %c0_i32, %c0_i32_0 : i32, i32, i32
  }
  func.func @transform_1(%arg0: i32) -> (i32, i32) {
    %c0_i32 = arith.constant 0 : i32
    %c0_i32_0 = arith.constant 0 : i32
    %c0_i32_1 = arith.constant 0 : i32
    return %c0_i32, %c0_i32_0 : i32, i32
  }
  func.func @transform_2(%arg0: i32) -> (i32, i32) {
    %c0_i32 = arith.constant 0 : i32
    %c0_i32_0 = arith.constant 0 : i32
    %c0_i32_1 = arith.constant 0 : i32
    return %c0_i32, %c0_i32_0 : i32, i32
  }
  func.func @transform_3(%arg0: i32) -> (i32, i32) {
    %c0_i32 = arith.constant 0 : i32
    %c0_i32_0 = arith.constant 0 : i32
    %c0_i32_1 = arith.constant 0 : i32
    return %c0_i32, %c0_i32_0 : i32, i32
  }
  func.func @transform_4(%arg0: i32) -> (i32, i32) {
    %c0_i32 = arith.constant 0 : i32
    %c0_i32_0 = arith.constant 0 : i32
    %c0_i32_1 = arith.constant 0 : i32
    return %c0_i32, %c0_i32_0 : i32, i32
  }
  func.func @transform_5(%arg0: i32) -> (i32, i32, i32) {
    %c0_i32 = arith.constant 0 : i32
    %c0_i32_0 = arith.constant 0 : i32
    %c0_i32_1 = arith.constant 0 : i32
    return %arg0, %c0_i32, %c0_i32_0 : i32, i32, i32
  }
}

</mosaic_0001>

<llo_original>
// kernel: tpu_custom_call.1
$region0: #{tpu_custom_call.1}
  #allocation0 [shape = 'u32[]', space=smem, size = 0x4, offset = 0x4, fixed_abs, tag = 'smem constant byte address 0x4 - core index']
  #allocation1 [shape = 'u32[72,128]{1,0:T(1,128)}', space=vmem, size = 0x9000, scoped, tag = 'internal scratch']
  %s0 = inlined_call_operand.hbm [shape: f32[3,16,256], index: 0, kind: input, shape index: {}]
  %s1 = inlined_call_operand.vmem [shape: f32[16,8], index: 1, kind: input, shape index: {}]
  %s2 = inlined_call_operand.vmem [shape: f32[1,8], index: 2, kind: input, shape index: {}]
  %s3 = inlined_call_operand.vmem [shape: f32[8,16], index: 3, kind: input, shape index: {}]
  %s4 = inlined_call_operand.vmem [shape: f32[1,16], index: 4, kind: input, shape index: {}]
  %s5 = inlined_call_operand.hbm [shape: f32[3,16,256], index: 5, kind: output, shape index: {}]
  %s6 = sld [smem:[#allocation0]]
  $region57: #{tpu_custom_call.1} parent=0
    _
  %s8 = ssub.s32 1, %s6
  %s9 = scalar_select 0, %s8, %s6
  $region1: #{tpu_custom_call.1} parent=0
    #allocation2 [shape = 'u8[65536]{0}', space=vmem, size = 0x10000, scoped, tag = 'input window, operand 0']
    #allocation3 [shape = 's32[2]{0}', space=sflag, size = 0x8, scoped, tag = 'scoped memory for tpu_custom_call.1']
    #allocation4 [shape = 's32[2]{0}', space=sflag, size = 0x8, scoped, tag = 'scoped memory for tpu_custom_call.1']
    #allocation5 [shape = 'u8[65536]{0}', space=vmem, size = 0x10000, scoped, tag = 'output window, operand 0']
    %10 = vsyncpa [#allocation3], 0
    %s11 = scalar_lea.sflag [#allocation3], 1
    %12 = vsyncpa %s11, 0
    %13 = vsyncpa [#allocation4], 0
    %s14 = scalar_lea.sflag [#allocation4], 1
    %15 = vsyncpa %s14, 0
    loop: start=0, step=1, limit=4
    $region2: #{tpu_custom_call.1} parent=1 // loop_pre_header
      _
    $region3: #{tpu_custom_call.1} parent=1 // loop_header
      %s17 = sphi 0, %s21
      %p18 = scmp.ge.s32.totalorder %s17, 4
      %s27 = sphi 0, %s29
      %s30 = sphi 0, %s27
      %s31 = sphi 0, %s30
      %s47 = sphi 0, %s31
      %s51 = sphi 0, %s51
      %s53 = sphi 0, %s51
      %s54 = sphi 0, %s53
      %s68 = sphi 0, %s54
      %s72 = sphi 0, %s72
      %s74 = sphi 0, %s72
      %s75 = sphi 0, %s74
      %s89 = sphi 0, %s75
      %s93 = sphi 0, %s93
      %s95 = sphi 0, %s93
      %s96 = sphi 0, %s95
      %s110 = sphi 0, %s96
      %s114 = sphi 0, %s114
      %s116 = sphi 0, %s114
      %s117 = sphi 0, %s116
      %s131 = sphi 0, %s117
      %s137 = sphi 0, %s139
      %s140 = sphi 0, %s137
      %s141 = sphi 0, %s140
      %s157 = sphi 0, %s141
    $region4: #{tpu_custom_call.1} parent=1 // loop_header_branch
      %20 = sbr.rel (%p18) target = $region8
    $region5: #{tpu_custom_call.1} parent=1 // loop_body
      %s22 = ssub.s32 %s17, 1
      %s23 = ssub.s32 %s17, 2
      %s24 = sadd.s32 %s17, 1
      %s25 = ssub.s32 %s17, %s24
      %p26 = scmp.eq.s32.totalorder %s25, 0
      %s28 = sadd.s32 %s27, 1
      %s29 = scalar_select %p26, %s27, %s28
      %p32 = pneg %p26
      %p33 = scmp.eq.s32.totalorder %s17, 1
      %p34 = por %p32, %p33
      %p35 = scmp.ne.s32.totalorder %s27, %s30
      %p36 = scmp.eq.s32.totalorder %s17, 0
      %p37 = por %p35, %p36
      %p38 = scmp.ne.s32.totalorder %s27, %s30
      %p39 = scmp.eq.s32.totalorder %s22, 1
      %p40 = por %p38, %p39
      %p41 = scmp.ne.s32.totalorder %s30, %s31
      %p42 = scmp.eq.s32.totalorder %s22, 0
      %p43 = por %p41, %p42
      %p44 = scmp.ne.s32.totalorder %s30, %s31
      %p45 = scmp.eq.s32.totalorder %s23, 1
      %p46 = por %p44, %p45
      %p48 = scmp.ne.s32.totalorder %s31, %s47
      %p49 = scmp.eq.s32.totalorder %s23, 0
      %p50 = por %p48, %p49
      %s52 = sadd.s32 %s51, 1
      %p55 = scmp.eq.s32.totalorder %s17, 1
      %p56 = scmp.ne.s32.totalorder %s51, %s53
      %p57 = scmp.eq.s32.totalorder %s17, 0
      %p58 = por %p56, %p57
      %p59 = scmp.ne.s32.totalorder %s51, %s53
      %p60 = scmp.eq.s32.totalorder %s22, 1
      %p61 = por %p59, %p60
      %p62 = scmp.ne.s32.totalorder %s53, %s54
      %p63 = scmp.eq.s32.totalorder %s22, 0
      %p64 = por %p62, %p63
      %p65 = scmp.ne.s32.totalorder %s53, %s54
      %p66 = scmp.eq.s32.totalorder %s23, 1
      %p67 = por %p65, %p66
      %p69 = scmp.ne.s32.totalorder %s54, %s68
      %p70 = scmp.eq.s32.totalorder %s23, 0
      %p71 = por %p69, %p70
      %s73 = sadd.s32 %s72, 1
      %p76 = scmp.eq.s32.totalorder %s17, 1
      %p77 = scmp.ne.s32.totalorder %s72, %s74
      %p78 = scmp.eq.s32.totalorder %s17, 0
      %p79 = por %p77, %p78
      %p80 = scmp.ne.s32.totalorder %s72, %s74
      %p81 = scmp.eq.s32.totalorder %s22, 1
      %p82 = por %p80, %p81
      %p83 = scmp.ne.s32.totalorder %s74, %s75
      %p84 = scmp.eq.s32.totalorder %s22, 0
      %p85 = por %p83, %p84
      %p86 = scmp.ne.s32.totalorder %s74, %s75
      %p87 = scmp.eq.s32.totalorder %s23, 1
      %p88 = por %p86, %p87
      %p90 = scmp.ne.s32.totalorder %s75, %s89
      %p91 = scmp.eq.s32.totalorder %s23, 0
      %p92 = por %p90, %p91
      %s94 = sadd.s32 %s93, 1
      %p97 = scmp.eq.s32.totalorder %s17, 1
      %p98 = scmp.ne.s32.totalorder %s93, %s95
      %p99 = scmp.eq.s32.totalorder %s17, 0
      %p100 = por %p98, %p99
      %p101 = scmp.ne.s32.totalorder %s93, %s95
      %p102 = scmp.eq.s32.totalorder %s22, 1
      %p103 = por %p101, %p102
      %p104 = scmp.ne.s32.totalorder %s95, %s96
      %p105 = scmp.eq.s32.totalorder %s22, 0
      %p106 = por %p104, %p105
      %p107 = scmp.ne.s32.totalorder %s95, %s96
      %p108 = scmp.eq.s32.totalorder %s23, 1
      %p109 = por %p107, %p108
      %p111 = scmp.ne.s32.totalorder %s96, %s110
      %p112 = scmp.eq.s32.totalorder %s23, 0
      %p113 = por %p111, %p112
      %s115 = sadd.s32 %s114, 1
      %p118 = scmp.eq.s32.totalorder %s17, 1
      %p119 = scmp.ne.s32.totalorder %s114, %s116
      %p120 = scmp.eq.s32.totalorder %s17, 0
      %p121 = por %p119, %p120
      %p122 = scmp.ne.s32.totalorder %s114, %s116
      %p123 = scmp.eq.s32.totalorder %s22, 1
      %p124 = por %p122, %p123
      %p125 = scmp.ne.s32.totalorder %s116, %s117
      %p126 = scmp.eq.s32.totalorder %s22, 0
      %p127 = por %p125, %p126
      %p128 = scmp.ne.s32.totalorder %s116, %s117
      %p129 = scmp.eq.s32.totalorder %s23, 1
      %p130 = por %p128, %p129
      %p132 = scmp.ne.s32.totalorder %s117, %s131
      %p133 = scmp.eq.s32.totalorder %s23, 0
      %p134 = por %p132, %p133
      %s135 = ssub.s32 %s17, %s24
      %p136 = scmp.eq.s32.totalorder %s135, 0
      %s138 = sadd.s32 %s137, 1
      %s139 = scalar_select %p136, %s137, %s138
      %p142 = pneg %p136
      %p143 = scmp.eq.s32.totalorder %s17, 1
      %p144 = por %p142, %p143
      %p145 = scmp.ne.s32.totalorder %s137, %s140
      %p146 = scmp.eq.s32.totalorder %s17, 0
      %p147 = por %p145, %p146
      %p148 = scmp.ne.s32.totalorder %s137, %s140
      %p149 = scmp.eq.s32.totalorder %s22, 1
      %p150 = por %p148, %p149
      %p151 = scmp.ne.s32.totalorder %s140, %s141
      %p152 = scmp.eq.s32.totalorder %s22, 0
      %p153 = por %p151, %p152
      %p154 = scmp.ne.s32.totalorder %s140, %s141
      %p155 = scmp.eq.s32.totalorder %s23, 1
      %p156 = por %p154, %p155
      %p158 = scmp.ne.s32.totalorder %s141, %s157
      %p159 = scmp.eq.s32.totalorder %s23, 0
      %p160 = por %p158, %p159
      %p161 = scmp.le.s32.totalorder 1, %s17
      %p162 = scmp.lt.s32.totalorder %s17, 3
      %p163 = pnand %p161, %p162
      %p164 = pneg %p163
      // Predicated region
      $region9: #{tpu_custom_call.1} parent=5 // pred_check
        _
      $region10: #{tpu_custom_call.1} parent=5 // pred_check_branch
        %166 = sbr.rel (%p163) target = $region12
      $region11: #{tpu_custom_call.1} parent=5 // pred_region
        %s167 = ssub.s32 %s17, 1
        // Predicated region
        $region13: #{tpu_custom_call.1} parent=11 // pred_check
          %p168 = pneg %p64
        $region14: #{tpu_custom_call.1} parent=11 // pred_check_branch
          %170 = sbr.rel (%p168) target = $region16
        $region15: #{tpu_custom_call.1} parent=11 // pred_region
          _
        $region16: #{tpu_custom_call.1} parent=11 // pred_fallthru
          _
        // Predicated region
        $region17: #{tpu_custom_call.1} parent=11 // pred_check
          %p171 = pneg %p85
        $region18: #{tpu_custom_call.1} parent=11 // pred_check_branch
          %173 = sbr.rel (%p171) target = $region20
        $region19: #{tpu_custom_call.1} parent=11 // pred_region
          _
        $region20: #{tpu_custom_call.1} parent=11 // pred_fallthru
          _
        // Predicated region
        $region21: #{tpu_custom_call.1} parent=11 // pred_check
          %p174 = pneg %p106
        $region22: #{tpu_custom_call.1} parent=11 // pred_check_branch
          %176 = sbr.rel (%p174) target = $region24
        $region23: #{tpu_custom_call.1} parent=11 // pred_region
          _
        $region24: #{tpu_custom_call.1} parent=11 // pred_fallthru
          _
        // Predicated region
        $region25: #{tpu_custom_call.1} parent=11 // pred_check
          %p177 = pneg %p127
        $region26: #{tpu_custom_call.1} parent=11 // pred_check_branch
          %179 = sbr.rel (%p177) target = $region28
        $region27: #{tpu_custom_call.1} parent=11 // pred_region
          _
        $region28: #{tpu_custom_call.1} parent=11 // pred_fallthru
          _
      $region12: #{tpu_custom_call.1} parent=5 // pred_fallthru
        _
      %p180 = scmp.lt.s32.totalorder %s17, 2
      // Predicated region
      $region29: #{tpu_custom_call.1} parent=5 // pred_check
        %p181 = pneg %p180
      $region30: #{tpu_custom_call.1} parent=5 // pred_check_branch
        %183 = sbr.rel (%p181) target = $region32
      $region31: #{tpu_custom_call.1} parent=5 // pred_region
        // Predicated region
        $region33: #{tpu_custom_call.1} parent=31 // pred_check
          %p184 = pneg %p37
        $region34: #{tpu_custom_call.1} parent=31 // pred_check_branch
          %186 = sbr.rel (%p184) target = $region36
        $region35: #{tpu_custom_call.1} parent=31 // pred_region
          %s187 = sand.u32 %s27, 1
          %s188 = scalar_lea.sflag [#allocation3], %s187
          %s189 = sand.u32 %s27, 1
          %s190 = smul.addr %s189, 64
          %s191 = scalar_lea.vmem [#allocation2], %s190
          %s192 = smul.u32 2, %s17
          %s193 = ssub.s32 3, %s192
          %p194 = scmp.lt.s32.totalorder %s193, 2
          %s195 = scalar_select %p194, %s193, 2
          %s196 = smul.u32 8, %s195
          %s197 = smul.u32 %s196, 2
          %s198 = smul.u32 %s197, 2
          %s199 = ssub.s32 64, %s198
          %s200 = sshll.u32 %s199, 4
          %201 = vsyncadd %s188, %s200
          %p202 = scmp.ne.s32.totalorder 0, %s198
          %s203 = smul.addr %s192, 4
          %s204 = smul.addr %s203, 8
          %s205 = scalar_lea.hbm %s0, %s204
          %s206 = smul.u32 %s195, 2
          %s207 = smul.u32 16, %s206
          %s208 = sshll.u32 %s205, 4
          %s209 = int_to_ptr.hbm [resolvable:$true] %s208
          %s210 = sshll.u32 %s191, 4
          %s211 = int_to_ptr.vmem [resolvable:$true] %s210
          %s212 = sshll.u32 %s207, 4
          %216 = dma.hbm_to_vmem [thread:$0]  (%p202), %s209, %s212, %s211, %s188, 256, 256, 16
        $region36: #{tpu_custom_call.1} parent=31 // pred_fallthru
          _
      $region32: #{tpu_custom_call.1} parent=5 // pred_fallthru
        _
      %p217 = scmp.le.s32.totalorder 1, %s17
      %p218 = scmp.lt.s32.totalorder %s17, 3
      %p219 = pnand %p217, %p218
      %p220 = pneg %p219
      // Predicated region
      $region37: #{tpu_custom_call.1} parent=5 // pred_check
        _
      $region38: #{tpu_custom_call.1} parent=5 // pred_check_branch
        %222 = sbr.rel (%p219) target = $region40
      $region39: #{tpu_custom_call.1} parent=5 // pred_region
        %s223 = ssub.s32 %s17, 1
        %s224 = sand.u32 %s30, 1
        %s225 = scalar_lea.sflag [#allocation3], %s224
        %s226 = sand.u32 %s30, 1
        %s227 = smul.addr %s226, 64
        %s228 = scalar_lea.vmem [#allocation2], %s227
        // Predicated region
        $region41: #{tpu_custom_call.1} parent=39 // pred_check
          %p229 = pneg %p43
        $region42: #{tpu_custom_call.1} parent=39 // pred_check_branch
          %231 = sbr.rel (%p229) target = $region44
        $region43: #{tpu_custom_call.1} parent=39 // pred_region
          %233 = dma.done %s225, 1024
        $region44: #{tpu_custom_call.1} parent=39 // pred_fallthru
          _
        %s234 = sand.u32 %s30, 1
        %s235 = scalar_lea.sflag [#allocation3], %s234
        %s236 = sand.u32 %s30, 1
        %s237 = smul.addr %s236, 64
        %s238 = scalar_lea.vmem [#allocation2], %s237
        %p239 = pneg %p43
        %p240 = pneg %p40
        %p241 = pneg %p64
        %p242 = pneg %p61
        %p243 = pneg %p85
        %p244 = pneg %p82
        %p245 = pneg %p106
        %p246 = pneg %p103
        %p247 = pneg %p127
        %p248 = pneg %p124
        %p249 = pneg %p153
        %p250 = pneg %p150
        %s251 = sand.u32 %s140, 1
        %s252 = scalar_lea.sflag [#allocation4], %s251
        %s253 = sand.u32 %s140, 1
        %s254 = smul.addr %s253, 64
        %s255 = scalar_lea.vmem [#allocation5], %s254
        %s256 = smul.u32 2, %s22
        %s257 = ssub.s32 3, %s256
        %p258 = scmp.lt.s32.totalorder %s257, 2
        %s259 = scalar_select %p258, %s257, 2
        %s260 = smul.u32 8, %s259
        %s261 = smul.u32 %s260, 2
        %s262 = smul.u32 %s261, 2
        %s263 = smul.u32 2, %s22
        %s264 = ssub.s32 3, %s263
        %p265 = scmp.lt.s32.totalorder %s264, 2
        %s266 = scalar_select %p265, %s264, 2
        %s267 = smul.u32 8, %s266
        %s268 = smul.u32 %s267, 2
        %s269 = smul.u32 %s268, 2
        %v270 = vld [vmem:[%s228] sm:$0xff]
        %v271 = vld [vmem:[%s228 + $0x8] sm:$0xff]
        %v272 = vld [vmem:[%s228 + $0x10] sm:$0xff]
        %v273 = vld [vmem:[%s228 + $0x18] sm:$0xff]
        %v274 = vld [vmem:[%s228 + $0x20] sm:$0xff]
        %v275 = vld [vmem:[%s228 + $0x28] sm:$0xff]
        %v276 = vld [vmem:[%s228 + $0x30] sm:$0xff]
        %v277 = vld [vmem:[%s228 + $0x38] sm:$0xff]
        %v278 = vadd.f32 %v270, %v271
        %279 = vadd.xlane.f32.xlu0 %v278
        %v280 = vpop.xlane.xlu0 %279
        %v281 = vadd.f32 %v272, %v273
        %282 = vadd.xlane.f32.xlu0 %v281
        %v283 = vpop.xlane.xlu0 %282
        %v284 = vadd.f32 %v274, %v275
        %285 = vadd.xlane.f32.xlu0 %v284
        %v286 = vpop.xlane.xlu0 %285
        %v287 = vadd.f32 %v276, %v277
        %288 = vadd.xlane.f32.xlu0 %v287
        %v289 = vpop.xlane.xlu0 %288
        %v290 = vmul.f32 %v280, 0.00390625
        %v291 = vmul.f32 %v283, 0.00390625
        %v292 = vmul.f32 %v286, 0.00390625
        %v293 = vmul.f32 %v289, 0.00390625
        %v294 = vld [vmem:[%s1] sm:$0xff]
        %v295 = vld [vmem:[%s1 + $0x8] sm:$0xff]
        %v296 = vld [vmem:[%s2] sm:$0x1]
        %v298 = vperm.slane %v296, 0
        %v304 = vlaneseq
        %v305 = vand.u32 %v304, 127
        %v306 = vperm.slane %v290, %v305
        %v307 = vadd.s32 %v305, 4294967288
        %v308 = vperm.slane %v291, %v307
        %vm309 = vcmask 130112
        %v310 = vsel %vm309, %v308, %v306
        %v311 = vperm.slane %v292, %v305
        %v312 = vperm.slane %v293, %v307
        %v313 = vsel %vm309, %v312, %v311
        %vm314 = vcmask 1041409
        %v315 = vsel %vm314, %v313, %v310
        %vm316 = vcmask 130048
        %v317 = vsel %vm316, %v315, 0
        %319 = vmatpush.msra.mxu0 0.0
        %320 = vmatpush.msra.mxu0 0.0
        %321 = vmatpush.msra.mxu0 0.0
        %322 = vmatpush.msra.mxu0 0.0
        %323 = vmatpush.msra.mxu0 0.0
        %324 = vmatpush.msra.mxu0 0.0
        %325 = vmatpush.msra.mxu0 0.0
        %326 = vmatpush.msra.mxu0 0.0
        %327 = vmatpush.msra.mxu0 0.0
        %328 = vmatpush.msra.mxu0 0.0
        %329 = vmatpush.msra.mxu0 0.0
        %330 = vmatpush.msra.mxu0 0.0
        %331 = vmatpush.msra.mxu0 0.0
        %332 = vmatpush.msra.mxu0 0.0
        %333 = vmatpush.msra.mxu0 %v295
        %334 = vmatpush.msra.mxu0 %v294
        %335 = vmatmul.f32.gmra.mxu0 %v317
        %v336 = vpop.f32.mrf.mxu0
        %v337 = vadd.f32 %v298, %v336
        %338 = vdwg.mxu0
        %v339 = vmax.f32 %v337, 0.0
        %v340 = vld [vmem:[%s3] sm:$0xff]
        %v341 = vld [vmem:[%s4] sm:$0x1]
        %v343 = vperm.slane %v341, 0
        %vm345 = vcmask 64512
        %v347 = vsel %vm345, %v339, 0
        %349 = vmatpush.msra.mxu0 0.0
        %350 = vmatpush.msra.mxu0 0.0
        %351 = vmatpush.msra.mxu0 0.0
        %352 = vmatpush.msra.mxu0 0.0
        %353 = vmatpush.msra.mxu0 0.0
        %354 = vmatpush.msra.mxu0 0.0
        %355 = vmatpush.msra.mxu0 0.0
        %356 = vmatpush.msra.mxu0 0.0
        %357 = vmatpush.msra.mxu0 0.0
        %358 = vmatpush.msra.mxu0 0.0
        %359 = vmatpush.msra.mxu0 0.0
        %360 = vmatpush.msra.mxu0 0.0
        %361 = vmatpush.msra.mxu0 0.0
        %362 = vmatpush.msra.mxu0 0.0
        %363 = vmatpush.msra.mxu0 0.0
        %364 = vmatpush.msra.mxu0 %v340
        %365 = vmatmul.f32.gmra.mxu0 %v347
        %v366 = vpop.f32.mrf.mxu0
        %v367 = vadd.f32 %v343, %v366
        %368 = vdwg.mxu0
        %v369 = vadd.f32 %v367, 3.0
        %v370 = vmax.f32 %v369, 0.0
        %v371 = vmin.f32 %v370, 6.0
        %v372 = vmul.f32 %v371, 0.16666667
        %v373 = vperm.slane %v372, 0
        %v374 = vlaneseq
        %v375 = vshrl.u32 %v374, 7
        %377 = vset.pattern.permute.xlu0 %v375
        %378 = vperm.xlu0 %377, %v373
        %v379 = vpop.permute.xlu0 %378
        %v380 = vlaneseq
        %v381 = vshrl.u32 %v380, 7
        %v382 = vadd.s32 %v381, 8
        %383 = vset.pattern.permute.xlu0 %v382
        %384 = vperm.xlu0 %383, %v373
        %v385 = vpop.permute.xlu0 %384
        %v386 = vperm.slane %v372, 1
        %v387 = vlaneseq
        %v388 = vshrl.u32 %v387, 7
        %390 = vset.pattern.permute.xlu0 %v388
        %391 = vperm.xlu0 %390, %v386
        %v392 = vpop.permute.xlu0 %391
        %v393 = vlaneseq
        %v394 = vshrl.u32 %v393, 7
        %v395 = vadd.s32 %v394, 8
        %396 = vset.pattern.permute.xlu0 %v395
        %397 = vperm.xlu0 %396, %v386
        %v398 = vpop.permute.xlu0 %397
        %v399 = vmul.f32 %v270, %v379
        %v400 = vmul.f32 %v271, %v379
        %v401 = vmul.f32 %v272, %v385
        %v402 = vmul.f32 %v273, %v385
        %v403 = vmul.f32 %v274, %v392
        %v404 = vmul.f32 %v275, %v392
        %v405 = vmul.f32 %v276, %v398
        %v406 = vmul.f32 %v277, %v398
        %407 = vst [vmem:[%s255] sm:$0xff] %v399
        %408 = vst [vmem:[%s255 + $0x8] sm:$0xff] %v400
        %409 = vst [vmem:[%s255 + $0x10] sm:$0xff] %v401
        %410 = vst [vmem:[%s255 + $0x18] sm:$0xff] %v402
        %411 = vst [vmem:[%s255 + $0x20] sm:$0xff] %v403
        %412 = vst [vmem:[%s255 + $0x28] sm:$0xff] %v404
        %413 = vst [vmem:[%s255 + $0x30] sm:$0xff] %v405
        %414 = vst [vmem:[%s255 + $0x38] sm:$0xff] %v406
        %s415 = sand.u32 %s140, 1
        %s416 = scalar_lea.sflag [#allocation4], %s415
        %s417 = sand.u32 %s140, 1
        %s418 = smul.addr %s417, 64
        %s419 = scalar_lea.vmem [#allocation5], %s418
        // Predicated region
        $region45: #{tpu_custom_call.1} parent=39 // pred_check
          %p420 = pneg %p150
        $region46: #{tpu_custom_call.1} parent=39 // pred_check_branch
          %422 = sbr.rel (%p420) target = $region48
        $region47: #{tpu_custom_call.1} parent=39 // pred_region
          %s423 = smul.u32 2, %s22
          %s424 = ssub.s32 3, %s423
          %p425 = scmp.lt.s32.totalorder %s424, 2
          %s426 = scalar_select %p425, %s424, 2
          %s427 = smul.u32 8, %s426
          %s428 = smul.u32 %s427, 2
          %s429 = smul.u32 %s428, 2
          %s430 = ssub.s32 64, %s429
          %s431 = sshll.u32 %s430, 4
          %432 = vsyncadd %s416, %s431
          %p433 = scmp.ne.s32.totalorder 0, %s429
          %s434 = smul.addr %s423, 4
          %s435 = smul.addr %s434, 8
          %s436 = scalar_lea.hbm %s5, %s435
          %s437 = smul.u32 %s426, 2
          %s438 = smul.u32 16, %s437
          %s439 = sshll.u32 %s419, 4
          %s440 = int_to_ptr.vmem [resolvable:$true] %s439
          %s441 = sshll.u32 %s436, 4
          %s442 = int_to_ptr.hbm [resolvable:$true] %s441
          %s443 = sshll.u32 %s438, 4
          %447 = dma.vmem_to_hbm [thread:$0]  (%p433), %s440, %s443, %s442, %s416, 256, 256, 16
        $region48: #{tpu_custom_call.1} parent=39 // pred_fallthru
          _
      $region40: #{tpu_custom_call.1} parent=5 // pred_fallthru
        _
      %p448 = scmp.le.s32.totalorder 2, %s17
      // Predicated region
      $region49: #{tpu_custom_call.1} parent=5 // pred_check
        %p449 = pneg %p448
      $region50: #{tpu_custom_call.1} parent=5 // pred_check_branch
        %451 = sbr.rel (%p449) target = $region52
      $region51: #{tpu_custom_call.1} parent=5 // pred_region
        %s452 = ssub.s32 %s17, 2
        // Predicated region
        $region53: #{tpu_custom_call.1} parent=51 // pred_check
          %p453 = pneg %p156
        $region54: #{tpu_custom_call.1} parent=51 // pred_check_branch
          %455 = sbr.rel (%p453) target = $region56
        $region55: #{tpu_custom_call.1} parent=51 // pred_region
          %s456 = sand.u32 %s141, 1
          %s457 = scalar_lea.sflag [#allocation4], %s456
          %s458 = sand.u32 %s141, 1
          %s459 = smul.addr %s458, 64
          %s460 = scalar_lea.vmem [#allocation5], %s459
          %462 = dma.done %s457, 1024
        $region56: #{tpu_custom_call.1} parent=51 // pred_fallthru
          _
      $region52: #{tpu_custom_call.1} parent=5 // pred_fallthru
        _
    $region6: #{tpu_custom_call.1} parent=1 // loop_footer
      %s21 = sadd.s32 1, %s17
    $region7: #{tpu_custom_call.1} parent=1 // loop_footer_branch
      %16 = sbr.rel target = $region3
    $region8: #{tpu_custom_call.1} parent=1 // loop_exit
      _
    %463 = vsyncpa [#allocation3], 1
    %s464 = scalar_lea.sflag [#allocation3], 1
    %465 = vsyncpa %s464, 1
    %466 = vsyncpa [#allocation4], 1
    %s467 = scalar_lea.sflag [#allocation4], 1
    %468 = vsyncpa %s467, 1

// kernel: tpu_custom_call.1
$region0: #{tpu_custom_call.1}
  #allocation0 [shape = 'u32[]', space=smem, size = 0x4, offset = 0x4, fixed_abs, tag = 'smem constant byte address 0x4 - core index']
  #allocation1 [shape = 'u32[72,128]{1,0:T(1,128)}', space=vmem, size = 0x9000, scoped, tag = 'internal scratch']
  %s0 = inlined_call_operand.hbm [shape: f32[3,16,256], index: 0, kind: input, shape index: {}]
  %s1 = inlined_call_operand.vmem [shape: f32[16,8], index: 1, kind: input, shape index: {}]
  %s2 = inlined_call_operand.vmem [shape: f32[1,8], index: 2, kind: input, shape index: {}]
  %s3 = inlined_call_operand.vmem [shape: f32[8,16], index: 3, kind: input, shape index: {}]
  %s4 = inlined_call_operand.vmem [shape: f32[1,16], index: 4, kind: input, shape index: {}]
  %s5 = inlined_call_operand.hbm [shape: f32[3,16,256], index: 5, kind: output, shape index: {}]
  %s6 = sld [smem:[#allocation0]]
  $region57: #{tpu_custom_call.1} parent=0
    _
  %s8 = ssub.s32 1, %s6
  %s9 = scalar_select 0, %s8, %s6
  $region1: #{tpu_custom_call.1} parent=0
    #allocation2 [shape = 'u8[65536]{0}', space=vmem, size = 0x10000, scoped, tag = 'input window, operand 0']
    #allocation3 [shape = 's32[2]{0}', space=sflag, size = 0x8, scoped, tag = 'scoped memory for tpu_custom_call.1']
    #allocation4 [shape = 's32[2]{0}', space=sflag, size = 0x8, scoped, tag = 'scoped memory for tpu_custom_call.1']
    #allocation5 [shape = 'u8[65536]{0}', space=vmem, size = 0x10000, scoped, tag = 'output window, operand 0']
    %10 = vsyncpa [#allocation3], 0
    %s11 = scalar_lea.sflag [#allocation3], 1
    %12 = vsyncpa %s11, 0
    %13 = vsyncpa [#allocation4], 0
    %s14 = scalar_lea.sflag [#allocation4], 1
    %15 = vsyncpa %s14, 0
    loop: start=0, step=1, limit=4
    $region2: #{tpu_custom_call.1} parent=1 // loop_pre_header
      _
    $region3: #{tpu_custom_call.1} parent=1 // loop_header
      %s17 = sphi 0, %s21
      %p18 = scmp.ge.s32.totalorder %s17, 4
      %s27 = sphi 0, %s29
      %s30 = sphi 0, %s27
      %s31 = sphi 0, %s30
      %s47 = sphi 0, %s31
      %s51 = sphi 0, %s51
      %s53 = sphi 0, %s51
      %s54 = sphi 0, %s53
      %s68 = sphi 0, %s54
      %s72 = sphi 0, %s72
      %s74 = sphi 0, %s72
      %s75 = sphi 0, %s74
      %s89 = sphi 0, %s75
      %s93 = sphi 0, %s93
      %s95 = sphi 0, %s93
      %s96 = sphi 0, %s95
      %s110 = sphi 0, %s96
      %s114 = sphi 0, %s114
      %s116 = sphi 0, %s114
      %s117 = sphi 0, %s116
      %s131 = sphi 0, %s117
      %s137 = sphi 0, %s139
      %s140 = sphi 0, %s137
      %s141 = sphi 0, %s140
      %s157 = sphi 0, %s141
    $region4: #{tpu_custom_call.1} parent=1 // loop_header_branch
      %20 = sbr.rel (%p18) target = $region8
    $region5: #{tpu_custom_call.1} parent=1 // loop_body
      %s22 = ssub.s32 %s17, 1
      %s23 = ssub.s32 %s17, 2
      %s24 = sadd.s32 %s17, 1
      %s25 = ssub.s32 %s17, %s24
      %p26 = scmp.eq.s32.totalorder %s25, 0
      %s28 = sadd.s32 %s27, 1
      %s29 = scalar_select %p26, %s27, %s28
      %p32 = pneg %p26
      %p33 = scmp.eq.s32.totalorder %s17, 1
      %p34 = por %p32, %p33
      %p35 = scmp.ne.s32.totalorder %s27, %s30
      %p36 = scmp.eq.s32.totalorder %s17, 0
      %p37 = por %p35, %p36
      %p38 = scmp.ne.s32.totalorder %s27, %s30
      %p39 = scmp.eq.s32.totalorder %s22, 1
      %p40 = por %p38, %p39
      %p41 = scmp.ne.s32.totalorder %s30, %s31
      %p42 = scmp.eq.s32.totalorder %s22, 0
      %p43 = por %p41, %p42
      %p44 = scmp.ne.s32.totalorder %s30, %s31
      %p45 = scmp.eq.s32.totalorder %s23, 1
      %p46 = por %p44, %p45
      %p48 = scmp.ne.s32.totalorder %s31, %s47
      %p49 = scmp.eq.s32.totalorder %s23, 0
      %p50 = por %p48, %p49
      %s52 = sadd.s32 %s51, 1
      %p55 = scmp.eq.s32.totalorder %s17, 1
      %p56 = scmp.ne.s32.totalorder %s51, %s53
      %p57 = scmp.eq.s32.totalorder %s17, 0
      %p58 = por %p56, %p57
      %p59 = scmp.ne.s32.totalorder %s51, %s53
      %p60 = scmp.eq.s32.totalorder %s22, 1
      %p61 = por %p59, %p60
      %p62 = scmp.ne.s32.totalorder %s53, %s54
      %p63 = scmp.eq.s32.totalorder %s22, 0
      %p64 = por %p62, %p63
      %p65 = scmp.ne.s32.totalorder %s53, %s54
      %p66 = scmp.eq.s32.totalorder %s23, 1
      %p67 = por %p65, %p66
      %p69 = scmp.ne.s32.totalorder %s54, %s68
      %p70 = scmp.eq.s32.totalorder %s23, 0
      %p71 = por %p69, %p70
      %s73 = sadd.s32 %s72, 1
      %p76 = scmp.eq.s32.totalorder %s17, 1
      %p77 = scmp.ne.s32.totalorder %s72, %s74
      %p78 = scmp.eq.s32.totalorder %s17, 0
      %p79 = por %p77, %p78
      %p80 = scmp.ne.s32.totalorder %s72, %s74
      %p81 = scmp.eq.s32.totalorder %s22, 1
      %p82 = por %p80, %p81
      %p83 = scmp.ne.s32.totalorder %s74, %s75
      %p84 = scmp.eq.s32.totalorder %s22, 0
      %p85 = por %p83, %p84
      %p86 = scmp.ne.s32.totalorder %s74, %s75
      %p87 = scmp.eq.s32.totalorder %s23, 1
      %p88 = por %p86, %p87
      %p90 = scmp.ne.s32.totalorder %s75, %s89
      %p91 = scmp.eq.s32.totalorder %s23, 0
      %p92 = por %p90, %p91
      %s94 = sadd.s32 %s93, 1
      %p97 = scmp.eq.s32.totalorder %s17, 1
      %p98 = scmp.ne.s32.totalorder %s93, %s95
      %p99 = scmp.eq.s32.totalorder %s17, 0
      %p100 = por %p98, %p99
      %p101 = scmp.ne.s32.totalorder %s93, %s95
      %p102 = scmp.eq.s32.totalorder %s22, 1
      %p103 = por %p101, %p102
      %p104 = scmp.ne.s32.totalorder %s95, %s96
      %p105 = scmp.eq.s32.totalorder %s22, 0
      %p106 = por %p104, %p105
      %p107 = scmp.ne.s32.totalorder %s95, %s96
      %p108 = scmp.eq.s32.totalorder %s23, 1
      %p109 = por %p107, %p108
      %p111 = scmp.ne.s32.totalorder %s96, %s110
      %p112 = scmp.eq.s32.totalorder %s23, 0
      %p113 = por %p111, %p112
      %s115 = sadd.s32 %s114, 1
      %p118 = scmp.eq.s32.totalorder %s17, 1
      %p119 = scmp.ne.s32.totalorder %s114, %s116
      %p120 = scmp.eq.s32.totalorder %s17, 0
      %p121 = por %p119, %p120
      %p122 = scmp.ne.s32.totalorder %s114, %s116
      %p123 = scmp.eq.s32.totalorder %s22, 1
      %p124 = por %p122, %p123
      %p125 = scmp.ne.s32.totalorder %s116, %s117
      %p126 = scmp.eq.s32.totalorder %s22, 0
      %p127 = por %p125, %p126
      %p128 = scmp.ne.s32.totalorder %s116, %s117
      %p129 = scmp.eq.s32.totalorder %s23, 1
      %p130 = por %p128, %p129
      %p132 = scmp.ne.s32.totalorder %s117, %s131
      %p133 = scmp.eq.s32.totalorder %s23, 0
      %p134 = por %p132, %p133
      %s135 = ssub.s32 %s17, %s24
      %p136 = scmp.eq.s32.totalorder %s135, 0
      %s138 = sadd.s32 %s137, 1
      %s139 = scalar_select %p136, %s137, %s138
      %p142 = pneg %p136
      %p143 = scmp.eq.s32.totalorder %s17, 1
      %p144 = por %p142, %p143
      %p145 = scmp.ne.s32.totalorder %s137, %s140
      %p146 = scmp.eq.s32.totalorder %s17, 0
      %p147 = por %p145, %p146
      %p148 = scmp.ne.s32.totalorder %s137, %s140
      %p149 = scmp.eq.s32.totalorder %s22, 1
      %p150 = por %p148, %p149
      %p151 = scmp.ne.s32.totalorder %s140, %s141
      %p152 = scmp.eq.s32.totalorder %s22, 0
      %p153 = por %p151, %p152
      %p154 = scmp.ne.s32.totalorder %s140, %s141
      %p155 = scmp.eq.s32.totalorder %s23, 1
      %p156 = por %p154, %p155
      %p158 = scmp.ne.s32.totalorder %s141, %s157
      %p159 = scmp.eq.s32.totalorder %s23, 0
      %p160 = por %p158, %p159
      %p161 = scmp.le.s32.totalorder 1, %s17
      %p162 = scmp.lt.s32.totalorder %s17, 3
      %p163 = pnand %p161, %p162
      %p164 = pneg %p163
      // Predicated region
      $region9: #{tpu_custom_call.1} parent=5 // pred_check
        _
      $region10: #{tpu_custom_call.1} parent=5 // pred_check_branch
        %166 = sbr.rel (%p163) target = $region12
      $region11: #{tpu_custom_call.1} parent=5 // pred_region
        %s167 = ssub.s32 %s17, 1
        // Predicated region
        $region13: #{tpu_custom_call.1} parent=11 // pred_check
          %p168 = pneg %p64
        $region14: #{tpu_custom_call.1} parent=11 // pred_check_branch
          %170 = sbr.rel (%p168) target = $region16
        $region15: #{tpu_custom_call.1} parent=11 // pred_region
          _
        $region16: #{tpu_custom_call.1} parent=11 // pred_fallthru
          _
        // Predicated region
        $region17: #{tpu_custom_call.1} parent=11 // pred_check
          %p171 = pneg %p85
        $region18: #{tpu_custom_call.1} parent=11 // pred_check_branch
          %173 = sbr.rel (%p171) target = $region20
        $region19: #{tpu_custom_call.1} parent=11 // pred_region
          _
        $region20: #{tpu_custom_call.1} parent=11 // pred_fallthru
          _
        // Predicated region
        $region21: #{tpu_custom_call.1} parent=11 // pred_check
          %p174 = pneg %p106
        $region22: #{tpu_custom_call.1} parent=11 // pred_check_branch
          %176 = sbr.rel (%p174) target = $region24
        $region23: #{tpu_custom_call.1} parent=11 // pred_region
          _
        $region24: #{tpu_custom_call.1} parent=11 // pred_fallthru
          _
        // Predicated region
        $region25: #{tpu_custom_call.1} parent=11 // pred_check
          %p177 = pneg %p127
        $region26: #{tpu_custom_call.1} parent=11 // pred_check_branch
          %179 = sbr.rel (%p177) target = $region28
        $region27: #{tpu_custom_call.1} parent=11 // pred_region
          _
        $region28: #{tpu_custom_call.1} parent=11 // pred_fallthru
          _
      $region12: #{tpu_custom_call.1} parent=5 // pred_fallthru
        _
      %p180 = scmp.lt.s32.totalorder %s17, 2
      // Predicated region
      $region29: #{tpu_custom_call.1} parent=5 // pred_check
        %p181 = pneg %p180
      $region30: #{tpu_custom_call.1} parent=5 // pred_check_branch
        %183 = sbr.rel (%p181) target = $region32
      $region31: #{tpu_custom_call.1} parent=5 // pred_region
        // Predicated region
        $region33: #{tpu_custom_call.1} parent=31 // pred_check
          %p184 = pneg %p37
        $region34: #{tpu_custom_call.1} parent=31 // pred_check_branch
          %186 = sbr.rel (%p184) target = $region36
        $region35: #{tpu_custom_call.1} parent=31 // pred_region
          %s187 = sand.u32 %s27, 1
          %s188 = scalar_lea.sflag [#allocation3], %s187
          %s189 = sand.u32 %s27, 1
          %s190 = smul.addr %s189, 64
          %s191 = scalar_lea.vmem [#allocation2], %s190
          %s192 = smul.u32 2, %s17
          %s193 = ssub.s32 3, %s192
          %p194 = scmp.lt.s32.totalorder %s193, 2
          %s195 = scalar_select %p194, %s193, 2
          %s196 = smul.u32 8, %s195
          %s197 = smul.u32 %s196, 2
          %s198 = smul.u32 %s197, 2
          %s199 = ssub.s32 64, %s198
          %s200 = sshll.u32 %s199, 4
          %201 = vsyncadd %s188, %s200
          %p202 = scmp.ne.s32.totalorder 0, %s198
          %s203 = smul.addr %s192, 4
          %s204 = smul.addr %s203, 8
          %s205 = scalar_lea.hbm %s0, %s204
          %s206 = smul.u32 %s195, 2
          %s207 = smul.u32 16, %s206
          %s208 = sshll.u32 %s205, 4
          %s209 = int_to_ptr.hbm [resolvable:$true] %s208
          %s210 = sshll.u32 %s191, 4
          %s211 = int_to_ptr.vmem [resolvable:$true] %s210
          %s212 = sshll.u32 %s207, 4
          %216 = dma.hbm_to_vmem [thread:$0]  (%p202), %s209, %s212, %s211, %s188, 256, 256, 16
        $region36: #{tpu_custom_call.1} parent=31 // pred_fallthru
          _
      $region32: #{tpu_custom_call.1} parent=5 // pred_fallthru
        _
      %p217 = scmp.le.s32.totalorder 1, %s17
      %p218 = scmp.lt.s32.totalorder %s17, 3
      %p219 = pnand %p217, %p218
      %p220 = pneg %p219
      // Predicated region
      $region37: #{tpu_custom_call.1} parent=5 // pred_check
        _
      $region38: #{tpu_custom_call.1} parent=5 // pred_check_branch
        %222 = sbr.rel (%p219) target = $region40
      $region39: #{tpu_custom_call.1} parent=5 // pred_region
        %s223 = ssub.s32 %s17, 1
        %s224 = sand.u32 %s30, 1
        %s225 = scalar_lea.sflag [#allocation3], %s224
        %s226 = sand.u32 %s30, 1
        %s227 = smul.addr %s226, 64
        %s228 = scalar_lea.vmem [#allocation2], %s227
        // Predicated region
        $region41: #{tpu_custom_call.1} parent=39 // pred_check
          %p229 = pneg %p43
        $region42: #{tpu_custom_call.1} parent=39 // pred_check_branch
          %231 = sbr.rel (%p229) target = $region44
        $region43: #{tpu_custom_call.1} parent=39 // pred_region
          %233 = dma.done %s225, 1024
        $region44: #{tpu_custom_call.1} parent=39 // pred_fallthru
          _
        %s234 = sand.u32 %s30, 1
        %s235 = scalar_lea.sflag [#allocation3], %s234
        %s236 = sand.u32 %s30, 1
        %s237 = smul.addr %s236, 64
        %s238 = scalar_lea.vmem [#allocation2], %s237
        %p239 = pneg %p43
        %p240 = pneg %p40
        %p241 = pneg %p64
        %p242 = pneg %p61
        %p243 = pneg %p85
        %p244 = pneg %p82
        %p245 = pneg %p106
        %p246 = pneg %p103
        %p247 = pneg %p127
        %p248 = pneg %p124
        %p249 = pneg %p153
        %p250 = pneg %p150
        %s251 = sand.u32 %s140, 1
        %s252 = scalar_lea.sflag [#allocation4], %s251
        %s253 = sand.u32 %s140, 1
        %s254 = smul.addr %s253, 64
        %s255 = scalar_lea.vmem [#allocation5], %s254
        %s256 = smul.u32 2, %s22
        %s257 = ssub.s32 3, %s256
        %p258 = scmp.lt.s32.totalorder %s257, 2
        %s259 = scalar_select %p258, %s257, 2
        %s260 = smul.u32 8, %s259
        %s261 = smul.u32 %s260, 2
        %s262 = smul.u32 %s261, 2
        %s263 = smul.u32 2, %s22
        %s264 = ssub.s32 3, %s263
        %p265 = scmp.lt.s32.totalorder %s264, 2
        %s266 = scalar_select %p265, %s264, 2
        %s267 = smul.u32 8, %s266
        %s268 = smul.u32 %s267, 2
        %s269 = smul.u32 %s268, 2
        %v270 = vld [vmem:[%s228] sm:$0xff]
        %v271 = vld [vmem:[%s228 + $0x8] sm:$0xff]
        %v272 = vld [vmem:[%s228 + $0x10] sm:$0xff]
        %v273 = vld [vmem:[%s228 + $0x18] sm:$0xff]
        %v274 = vld [vmem:[%s228 + $0x20] sm:$0xff]
        %v275 = vld [vmem:[%s228 + $0x28] sm:$0xff]
        %v276 = vld [vmem:[%s228 + $0x30] sm:$0xff]
        %v277 = vld [vmem:[%s228 + $0x38] sm:$0xff]
        %v278 = vadd.f32 %v270, %v271
        %279 = vadd.xlane.f32.xlu0 %v278
        %v280 = vpop.xlane.xlu0 %279
        %v281 = vadd.f32 %v272, %v273
        %282 = vadd.xlane.f32.xlu0 %v281
        %v283 = vpop.xlane.xlu0 %282
        %v284 = vadd.f32 %v274, %v275
        %285 = vadd.xlane.f32.xlu0 %v284
        %v286 = vpop.xlane.xlu0 %285
        %v287 = vadd.f32 %v276, %v277
        %288 = vadd.xlane.f32.xlu0 %v287
        %v289 = vpop.xlane.xlu0 %288
        %v290 = vmul.f32 %v280, 0.00390625
        %v291 = vmul.f32 %v283, 0.00390625
        %v292 = vmul.f32 %v286, 0.00390625
        %v293 = vmul.f32 %v289, 0.00390625
        %v294 = vld [vmem:[%s1] sm:$0xff]
        %v295 = vld [vmem:[%s1 + $0x8] sm:$0xff]
        %v296 = vld [vmem:[%s2] sm:$0x1]
        %v298 = vperm.slane %v296, 0
        %v304 = vlaneseq
        %v305 = vand.u32 %v304, 127
        %v306 = vperm.slane %v290, %v305
        %v307 = vadd.s32 %v305, 4294967288
        %v308 = vperm.slane %v291, %v307
        %vm309 = vcmask 130112
        %v310 = vsel %vm309, %v308, %v306
        %v311 = vperm.slane %v292, %v305
        %v312 = vperm.slane %v293, %v307
        %v313 = vsel %vm309, %v312, %v311
        %vm314 = vcmask 1041409
        %v315 = vsel %vm314, %v313, %v310
        %vm316 = vcmask 130048
        %v317 = vsel %vm316, %v315, 0
        %319 = vmatpush.msra.mxu0 0.0
        %320 = vmatpush.msra.mxu0 0.0
        %321 = vmatpush.msra.mxu0 0.0
        %322 = vmatpush.msra.mxu0 0.0
        %323 = vmatpush.msra.mxu0 0.0
        %324 = vmatpush.msra.mxu0 0.0
        %325 = vmatpush.msra.mxu0 0.0
        %326 = vmatpush.msra.mxu0 0.0
        %327 = vmatpush.msra.mxu0 0.0
        %328 = vmatpush.msra.mxu0 0.0
        %329 = vmatpush.msra.mxu0 0.0
        %330 = vmatpush.msra.mxu0 0.0
        %331 = vmatpush.msra.mxu0 0.0
        %332 = vmatpush.msra.mxu0 0.0
        %333 = vmatpush.msra.mxu0 %v295
        %334 = vmatpush.msra.mxu0 %v294
        %335 = vmatmul.f32.gmra.mxu0 %v317
        %v336 = vpop.f32.mrf.mxu0
        %v337 = vadd.f32 %v298, %v336
        %338 = vdwg.mxu0
        %v339 = vmax.f32 %v337, 0.0
        %v340 = vld [vmem:[%s3] sm:$0xff]
        %v341 = vld [vmem:[%s4] sm:$0x1]
        %v343 = vperm.slane %v341, 0
        %vm345 = vcmask 64512
        %v347 = vsel %vm345, %v339, 0
        %349 = vmatpush.msra.mxu0 0.0
        %350 = vmatpush.msra.mxu0 0.0
        %351 = vmatpush.msra.mxu0 0.0
        %352 = vmatpush.msra.mxu0 0.0
        %353 = vmatpush.msra.mxu0 0.0
        %354 = vmatpush.msra.mxu0 0.0
        %355 = vmatpush.msra.mxu0 0.0
        %356 = vmatpush.msra.mxu0 0.0
        %357 = vmatpush.msra.mxu0 0.0
        %358 = vmatpush.msra.mxu0 0.0
        %359 = vmatpush.msra.mxu0 0.0
        %360 = vmatpush.msra.mxu0 0.0
        %361 = vmatpush.msra.mxu0 0.0
        %362 = vmatpush.msra.mxu0 0.0
        %363 = vmatpush.msra.mxu0 0.0
        %364 = vmatpush.msra.mxu0 %v340
        %365 = vmatmul.f32.gmra.mxu0 %v347
        %v366 = vpop.f32.mrf.mxu0
        %v367 = vadd.f32 %v343, %v366
        %368 = vdwg.mxu0
        %v369 = vadd.f32 %v367, 3.0
        %v370 = vmax.f32 %v369, 0.0
        %v371 = vmin.f32 %v370, 6.0
        %v372 = vmul.f32 %v371, 0.16666667
        %v373 = vperm.slane %v372, 0
        %v374 = vlaneseq
        %v375 = vshrl.u32 %v374, 7
        %377 = vset.pattern.permute.xlu0 %v375
        %378 = vperm.xlu0 %377, %v373
        %v379 = vpop.permute.xlu0 %378
        %v380 = vlaneseq
        %v381 = vshrl.u32 %v380, 7
        %v382 = vadd.s32 %v381, 8
        %383 = vset.pattern.permute.xlu0 %v382
        %384 = vperm.xlu0 %383, %v373
        %v385 = vpop.permute.xlu0 %384
        %v386 = vperm.slane %v372, 1
        %v387 = vlaneseq
        %v388 = vshrl.u32 %v387, 7
        %390 = vset.pattern.permute.xlu0 %v388
        %391 = vperm.xlu0 %390, %v386
        %v392 = vpop.permute.xlu0 %391
        %v393 = vlaneseq
        %v394 = vshrl.u32 %v393, 7
        %v395 = vadd.s32 %v394, 8
        %396 = vset.pattern.permute.xlu0 %v395
        %397 = vperm.xlu0 %396, %v386
        %v398 = vpop.permute.xlu0 %397
        %v399 = vmul.f32 %v270, %v379
        %v400 = vmul.f32 %v271, %v379
        %v401 = vmul.f32 %v272, %v385
        %v402 = vmul.f32 %v273, %v385
        %v403 = vmul.f32 %v274, %v392
        %v404 = vmul.f32 %v275, %v392
        %v405 = vmul.f32 %v276, %v398
        %v406 = vmul.f32 %v277, %v398
        %407 = vst [vmem:[%s255] sm:$0xff] %v399
        %408 = vst [vmem:[%s255 + $0x8] sm:$0xff] %v400
        %409 = vst [vmem:[%s255 + $0x10] sm:$0xff] %v401
        %410 = vst [vmem:[%s255 + $0x18] sm:$0xff] %v402
        %411 = vst [vmem:[%s255 + $0x20] sm:$0xff] %v403
        %412 = vst [vmem:[%s255 + $0x28] sm:$0xff] %v404
        %413 = vst [vmem:[%s255 + $0x30] sm:$0xff] %v405
        %414 = vst [vmem:[%s255 + $0x38] sm:$0xff] %v406
        %s415 = sand.u32 %s140, 1
        %s416 = scalar_lea.sflag [#allocation4], %s415
        %s417 = sand.u32 %s140, 1
        %s418 = smul.addr %s417, 64
        %s419 = scalar_lea.vmem [#allocation5], %s418
        // Predicated region
        $region45: #{tpu_custom_call.1} parent=39 // pred_check
          %p420 = pneg %p150
        $region46: #{tpu_custom_call.1} parent=39 // pred_check_branch
          %422 = sbr.rel (%p420) target = $region48
        $region47: #{tpu_custom_call.1} parent=39 // pred_region
          %s423 = smul.u32 2, %s22
          %s424 = ssub.s32 3, %s423
          %p425 = scmp.lt.s32.totalorder %s424, 2
          %s426 = scalar_select %p425, %s424, 2
          %s427 = smul.u32 8, %s426
          %s428 = smul.u32 %s427, 2
          %s429 = smul.u32 %s428, 2
          %s430 = ssub.s32 64, %s429
          %s431 = sshll.u32 %s430, 4
          %432 = vsyncadd %s416, %s431
          %p433 = scmp.ne.s32.totalorder 0, %s429
          %s434 = smul.addr %s423, 4
          %s435 = smul.addr %s434, 8
          %s436 = scalar_lea.hbm %s5, %s435
          %s437 = smul.u32 %s426, 2
          %s438 = smul.u32 16, %s437
          %s439 = sshll.u32 %s419, 4
          %s440 = int_to_ptr.vmem [resolvable:$true] %s439
          %s441 = sshll.u32 %s436, 4
          %s442 = int_to_ptr.hbm [resolvable:$true] %s441
          %s443 = sshll.u32 %s438, 4
          %447 = dma.vmem_to_hbm [thread:$0]  (%p433), %s440, %s443, %s442, %s416, 256, 256, 16
        $region48: #{tpu_custom_call.1} parent=39 // pred_fallthru
          _
      $region40: #{tpu_custom_call.1} parent=5 // pred_fallthru
        _
      %p448 = scmp.le.s32.totalorder 2, %s17
      // Predicated region
      $region49: #{tpu_custom_call.1} parent=5 // pred_check
        %p449 = pneg %p448
      $region50: #{tpu_custom_call.1} parent=5 // pred_check_branch
        %451 = sbr.rel (%p449) target = $region52
      $region51: #{tpu_custom_call.1} parent=5 // pred_region
        %s452 = ssub.s32 %s17, 2
        // Predicated region
        $region53: #{tpu_custom_call.1} parent=51 // pred_check
          %p453 = pneg %p156
        $region54: #{tpu_custom_call.1} parent=51 // pred_check_branch
          %455 = sbr.rel (%p453) target = $region56
        $region55: #{tpu_custom_call.1} parent=51 // pred_region
          %s456 = sand.u32 %s141, 1
          %s457 = scalar_lea.sflag [#allocation4], %s456
          %s458 = sand.u32 %s141, 1
          %s459 = smul.addr %s458, 64
          %s460 = scalar_lea.vmem [#allocation5], %s459
          %462 = dma.done %s457, 1024
        $region56: #{tpu_custom_call.1} parent=51 // pred_fallthru
          _
      $region52: #{tpu_custom_call.1} parent=5 // pred_fallthru
        _
    $region6: #{tpu_custom_call.1} parent=1 // loop_footer
      %s21 = sadd.s32 1, %s17
    $region7: #{tpu_custom_call.1} parent=1 // loop_footer_branch
      %16 = sbr.rel target = $region3
    $region8: #{tpu_custom_call.1} parent=1 // loop_exit
      _
    %463 = vsyncpa [#allocation3], 1
    %s464 = scalar_lea.sflag [#allocation3], 1
    %465 = vsyncpa %s464, 1
    %466 = vsyncpa [#allocation4], 1
    %s467 = scalar_lea.sflag [#allocation4], 1
    %468 = vsyncpa %s467, 1

</llo_original>
